<compile_context>
chip_gen: v7x
topology: tpu7x:2x2x1
jax: 0.10.0
libtpu: 0.0.40
codegen_flags: <defaults>
</compile_context>

<pallas_src>
import jax
import jax.numpy as jnp
from jax import lax
from jax.experimental import pallas as pl
from jax.experimental.pallas import tpu as pltpu
import numpy as np


def _wulayer_kernel(x_ref, noise_ref, mu_ref, ro_ref, b_ref, y_ref, w_ref, acc_ref):
    k = pl.program_id(1)

    # Numerically stable softplus: sd = log(1 + exp(ro)), guarded for large ro.
    ro = ro_ref[...]
    sd = jnp.where(ro > 20.0, ro, jnp.log1p(jnp.exp(jnp.minimum(ro, 20.0))))

    # Sample this weight tile: W = noise * sd + mu, and write it out (tiled
    # emission pipelines the store under the parameter-stream DMAs).
    w_tile = noise_ref[...] * sd + mu_ref[...]
    w_ref[...] = w_tile.astype(w_ref.dtype)

    # K-axis accumulator: init on first K step.
    @pl.when(k == 0)
    def _():
        acc_ref[...] = jnp.zeros_like(acc_ref)

    # y_tile += x_tile @ W_tile.T, expressed with contracting dims (1, 1) so
    # no transpose of the freshly computed W tile is materialized.
    acc_ref[...] += lax.dot_general(
        x_ref[...],
        w_tile,
        dimension_numbers=(((1,), (1,)), ((), ())),
        preferred_element_type=jnp.float32,
    )

    # Finalize: add bias and store on the last K step.
    @pl.when(k == pl.num_programs(1) - 1)
    def _():
        y_ref[...] = (acc_ref[...] + b_ref[...]).astype(y_ref.dtype)


def _round_up(x, m):
    return ((x + m - 1) // m) * m


def _pad2d(a, shape):
    if a.shape == shape:
        return a
    return jnp.zeros(shape, a.dtype).at[: a.shape[0], : a.shape[1]].set(a)


def wulayer_forward(x, mu, ro, b, noise, *, tn=256, tk=256):
    """Pallas implementation of WULayer.forward(x, new_weights=True).

    Returns (y, W): y = x @ W.T + b with W = noise * softplus(ro) + mu.
    """
    batch, input_size = x.shape
    output_size = mu.shape[0]
    dtype = x.dtype

    # Tile sizes: multiples of 128 (lane width), clamped to the padded dims.
    tn = min(tn, _round_up(output_size, 128))
    tk = min(tk, _round_up(input_size, 128))

    # Pad to TPU-friendly, lane-dense shapes.
    batch_p = _round_up(batch, 8)
    out_p = _round_up(output_size, tn)
    in_p = _round_up(input_size, tk)

    xp = _pad2d(x, (batch_p, in_p))
    mup = _pad2d(mu, (out_p, in_p))
    rop = _pad2d(ro, (out_p, in_p))
    noisep = _pad2d(noise, (out_p, in_p))
    bp = _pad2d(b.reshape(1, output_size), (1, out_p))

    grid = (out_p // tn, in_p // tk)

    y_p, w_p = pl.pallas_call(
        _wulayer_kernel,
        out_shape=(
            jax.ShapeDtypeStruct((batch_p, out_p), dtype),
            jax.ShapeDtypeStruct((out_p, in_p), dtype),
        ),
        grid_spec=pltpu.PrefetchScalarGridSpec(
            num_scalar_prefetch=0,
            grid=grid,
            in_specs=[
                pl.BlockSpec((batch_p, tk), lambda n, k: (0, k)),  # x
                pl.BlockSpec((tn, tk), lambda n, k: (n, k)),       # noise
                pl.BlockSpec((tn, tk), lambda n, k: (n, k)),       # mu
                pl.BlockSpec((tn, tk), lambda n, k: (n, k)),       # ro
                pl.BlockSpec((1, tn), lambda n, k: (0, n)),        # b
            ],
            out_specs=[
                pl.BlockSpec((batch_p, tn), lambda n, k: (0, n)),  # y (resident over k)
                pl.BlockSpec((tn, tk), lambda n, k: (n, k)),       # W
            ],
            scratch_shapes=[pltpu.VMEM((batch_p, tn), jnp.float32)],
        ),
        compiler_params=pltpu.CompilerParams(
            dimension_semantics=("parallel", "arbitrary"),
        ),
    )(xp, noisep, mup, rop, bp)

    y = y_p[:batch, :output_size]
    W = w_p[:output_size, :input_size]
    return y, W


def _reference(x, mu, ro, b, noise):
    sd = jnp.where(ro > 20.0, ro, jnp.log1p(jnp.exp(jnp.minimum(ro, 20.0))))
    W = noise * sd + mu
    y = x @ W.T + b
    return y, W


def _make_case(key, batch, input_size, output_size, dtype=jnp.float32):
    # Deterministic parameter init mirroring WULayer.__init__:
    #   mu = zeros(out, in);  ro = log(exp(1.5/sqrt(out)) - 1);  b = zeros(out)
    mu = jnp.zeros((output_size, input_size), dtype=dtype)
    ro_val = np.log(np.exp(1.5 / np.sqrt(output_size)) - 1.0).astype(np.float32)
    ro = jnp.full((output_size, input_size), ro_val, dtype=dtype)
    b = jnp.zeros((output_size,), dtype=dtype)
    kx, kn = jax.random.split(key)
    x = jax.random.normal(kx, (batch, input_size), dtype=dtype)
    noise = jax.random.normal(kn, (output_size, input_size), dtype=dtype)
    return x, mu, ro, b, noise


if __name__ == "__main__":
    key = jax.random.PRNGKey(0)
    k1, k2 = jax.random.split(key)

    # Case 1: lane-dense shapes, multi-tile grid (2 x 3) exercising the
    # K-axis accumulator and the parallel N axis.
    x, mu, ro, b, noise = _make_case(k1, batch=8, input_size=384, output_size=256)
    y, W = wulayer_forward(x, mu, ro, b, noise, tn=128, tk=128)
    jax.block_until_ready((y, W))
    y_ref, W_ref = _reference(x, mu, ro, b, noise)
    np.testing.assert_allclose(np.asarray(W), np.asarray(W_ref), rtol=1e-5, atol=1e-5)
    np.testing.assert_allclose(np.asarray(y), np.asarray(y_ref), rtol=1e-5, atol=1e-5)

    # Case 2: small, unaligned shapes (exercises the host-side padding path).
    x2, mu2, ro2, b2, noise2 = _make_case(k2, batch=5, input_size=40, output_size=24)
    y2, W2 = wulayer_forward(x2, mu2, ro2, b2, noise2)
    jax.block_until_ready((y2, W2))
    y2_ref, W2_ref = _reference(x2, mu2, ro2, b2, noise2)
    np.testing.assert_allclose(np.asarray(W2), np.asarray(W2_ref), rtol=1e-5, atol=1e-5)
    np.testing.assert_allclose(np.asarray(y2), np.asarray(y2_ref), rtol=1e-5, atol=1e-5)

    print("KERNEL_OK")
</pallas_src>

<mosaic_0001>
module attributes {stable_mosaic.version = 11 : i64} {
  func.func @_wulayer_kernel(%arg0: i32, %arg1: i32, %arg2: memref<8x128xf32, #tpu.memory_space<vmem>>, %arg3: memref<128x128xf32, #tpu.memory_space<vmem>>, %arg4: memref<128x128xf32, #tpu.memory_space<vmem>>, %arg5: memref<128x128xf32, #tpu.memory_space<vmem>>, %arg6: memref<1x128xf32, #tpu.memory_space<vmem>>, %arg7: memref<8x128xf32, #tpu.memory_space<vmem>>, %arg8: memref<128x128xf32, #tpu.memory_space<vmem>>, %arg9: memref<8x128xf32, #tpu.memory_space<vmem>>) attributes {dimension_semantics = [#tpu.dimension_semantics<parallel>, #tpu.dimension_semantics<arbitrary>], iteration_bounds = array<i64: 2, 3>, scalar_prefetch = 0 : i64, scratch_operands = 1 : i64, tpu.core_type = #tpu.core_type<tc>, window_params = [{transform_indices = @transform_0, window_bounds = array<i64: 8, 128>}, {transform_indices = @transform_1, window_bounds = array<i64: 128, 128>}, {transform_indices = @transform_2, window_bounds = array<i64: 128, 128>}, {transform_indices = @transform_3, window_bounds = array<i64: 128, 128>}, {transform_indices = @transform_4, window_bounds = array<i64: 1, 128>}, {transform_indices = @transform_5, window_bounds = array<i64: 8, 128>}, {transform_indices = @transform_6, window_bounds = array<i64: 128, 128>}]} {
    %c0 = arith.constant 0 : index
    %c0_0 = arith.constant 0 : index
    %0 = vector.load %arg5[%c0, %c0_0] : memref<128x128xf32, #tpu.memory_space<vmem>>, vector<128x128xf32>
    %cst = arith.constant 2.000000e+01 : f32
    %1 = vector.broadcast %cst : f32 to vector<128x128xf32>
    %2 = arith.cmpf ogt, %0, %1 : vector<128x128xf32>
    %cst_1 = arith.constant 2.000000e+01 : f32
    %3 = vector.broadcast %cst_1 : f32 to vector<128x128xf32>
    %4 = arith.minimumf %0, %3 : vector<128x128xf32>
    %5 = math.exp %4 : vector<128x128xf32>
    %6 = math.log1p %5 : vector<128x128xf32>
    %7 = arith.select %2, %0, %6 : vector<128x128xi1>, vector<128x128xf32>
    %c0_2 = arith.constant 0 : index
    %c0_3 = arith.constant 0 : index
    %8 = vector.load %arg3[%c0_2, %c0_3] : memref<128x128xf32, #tpu.memory_space<vmem>>, vector<128x128xf32>
    %9 = arith.mulf %8, %7 : vector<128x128xf32>
    %c0_4 = arith.constant 0 : index
    %c0_5 = arith.constant 0 : index
    %10 = vector.load %arg4[%c0_4, %c0_5] : memref<128x128xf32, #tpu.memory_space<vmem>>, vector<128x128xf32>
    %11 = arith.addf %9, %10 : vector<128x128xf32>
    %c0_6 = arith.constant 0 : index
    %c0_7 = arith.constant 0 : index
    %12 = vector.load %arg8[%c0_6, %c0_7] : memref<128x128xf32, #tpu.memory_space<vmem>>, vector<128x128xf32>
    tpu.vector_store %arg8[%c0_6, %c0_7], %11 {strides = array<i32>} : memref<128x128xf32, #tpu.memory_space<vmem>>, vector<128x128xf32>,
    %c0_i32 = arith.constant 0 : i32
    %13 = arith.cmpi eq, %arg1, %c0_i32 : i32
    %14 = arith.extui %13 : i1 to i32
    %c0_i32_8 = arith.constant 0 : i32
    %15 = arith.cmpi ne, %14, %c0_i32_8 : i32
    scf.if %15 {
      %cst_17 = arith.constant 0.000000e+00 : f32
      %24 = vector.broadcast %cst_17 : f32 to vector<8x128xf32>
      %c0_18 = arith.constant 0 : index
      %c0_19 = arith.constant 0 : index
      %25 = vector.load %arg9[%c0_18, %c0_19] : memref<8x128xf32, #tpu.memory_space<vmem>>, vector<8x128xf32>
      tpu.vector_store %arg9[%c0_18, %c0_19], %24 {strides = array<i32>} : memref<8x128xf32, #tpu.memory_space<vmem>>, vector<8x128xf32>,
    } else {
    }
    %c0_9 = arith.constant 0 : index
    %c0_10 = arith.constant 0 : index
    %16 = vector.load %arg9[%c0_9, %c0_10] : memref<8x128xf32, #tpu.memory_space<vmem>>, vector<8x128xf32>
    %c0_11 = arith.constant 0 : index
    %c0_12 = arith.constant 0 : index
    %17 = vector.load %arg2[%c0_11, %c0_12] : memref<8x128xf32, #tpu.memory_space<vmem>>, vector<8x128xf32>
    %cst_13 = arith.constant dense<0.000000e+00> : vector<8x128xf32>
    %18 = tpu.matmul %17, %11, %cst_13 {dimension_numbers = #tpu.dot_dimension_numbers<[1], [1], [0], [0], [0, 0, 1, 0], [], []>} : vector<8x128xf32>, vector<128x128xf32>, vector<8x128xf32> -> vector<8x128xf32>
    %19 = arith.addf %16, %18 : vector<8x128xf32>
    %c0_14 = arith.constant 0 : index
    %c0_15 = arith.constant 0 : index
    %20 = vector.load %arg9[%c0_14, %c0_15] : memref<8x128xf32, #tpu.memory_space<vmem>>, vector<8x128xf32>
    tpu.vector_store %arg9[%c0_14, %c0_15], %19 {strides = array<i32>} : memref<8x128xf32, #tpu.memory_space<vmem>>, vector<8x128xf32>,
    %c2_i32 = arith.constant 2 : i32
    %21 = arith.cmpi eq, %arg1, %c2_i32 : i32
    %22 = arith.extui %21 : i1 to i32
    %c0_i32_16 = arith.constant 0 : i32
    %23 = arith.cmpi ne, %22, %c0_i32_16 : i32
    scf.if %23 {
      %c0_17 = arith.constant 0 : index
      %c0_18 = arith.constant 0 : index
      %24 = vector.load %arg9[%c0_17, %c0_18] : memref<8x128xf32, #tpu.memory_space<vmem>>, vector<8x128xf32>
      %c0_19 = arith.constant 0 : index
      %c0_20 = arith.constant 0 : index
      %25 = vector.load %arg6[%c0_19, %c0_20] : memref<1x128xf32, #tpu.memory_space<vmem>>, vector<1x128xf32>
      %26 = vector.broadcast %25 : vector<1x128xf32> to vector<8x128xf32>
      %27 = arith.addf %24, %26 : vector<8x128xf32>
      %c0_21 = arith.constant 0 : index
      %c0_22 = arith.constant 0 : index
      %28 = vector.load %arg7[%c0_21, %c0_22] : memref<8x128xf32, #tpu.memory_space<vmem>>, vector<8x128xf32>
      tpu.vector_store %arg7[%c0_21, %c0_22], %27 {strides = array<i32>} : memref<8x128xf32, #tpu.memory_space<vmem>>, vector<8x128xf32>,
    } else {
    }
    return
  }
  func.func @transform_0(%arg0: i32, %arg1: i32) -> (i32, i32) {
    %c0_i32 = arith.constant 0 : i32
    %c0_i32_0 = arith.constant 0 : i32
    return %c0_i32, %arg1 : i32, i32
  }
  func.func @transform_1(%arg0: i32, %arg1: i32) -> (i32, i32) {
    %c0_i32 = arith.constant 0 : i32
    return %arg0, %arg1 : i32, i32
  }
  func.func @transform_2(%arg0: i32, %arg1: i32) -> (i32, i32) {
    %c0_i32 = arith.constant 0 : i32
    return %arg0, %arg1 : i32, i32
  }
  func.func @transform_3(%arg0: i32, %arg1: i32) -> (i32, i32) {
    %c0_i32 = arith.constant 0 : i32
    return %arg0, %arg1 : i32, i32
  }
  func.func @transform_4(%arg0: i32, %arg1: i32) -> (i32, i32) {
    %c0_i32 = arith.constant 0 : i32
    %c0_i32_0 = arith.constant 0 : i32
    return %c0_i32, %arg0 : i32, i32
  }
  func.func @transform_5(%arg0: i32, %arg1: i32) -> (i32, i32) {
    %c0_i32 = arith.constant 0 : i32
    %c0_i32_0 = arith.constant 0 : i32
    return %c0_i32, %arg0 : i32, i32
  }
  func.func @transform_6(%arg0: i32, %arg1: i32) -> (i32, i32) {
    %c0_i32 = arith.constant 0 : i32
    return %arg0, %arg1 : i32, i32
  }
}

</mosaic_0001>

<llo_original>
// kernel: tpu_custom_call.1
$region0: #{tpu_custom_call.1}
  #allocation0 [shape = 'u32[]', space=smem, size = 0x4, offset = 0x4, fixed_abs, tag = 'smem constant byte address 0x4 - core index']
  #allocation1 [shape = 'u32[144,128]{1,0:T(1,128)}', space=vmem, size = 0x12000, scoped, tag = 'internal scratch']
  #allocation2 [shape = 'f32[8,128]{1,0:T(8,128)}', space=vmem, size = 0x1000, scoped, tag = 'scratch operand']
  %s0 = inlined_call_operand.hbm [shape: f32[8,384], index: 0, kind: input, shape index: {}]
  %s1 = inlined_call_operand.hbm [shape: f32[256,384], index: 1, kind: input, shape index: {}]
  %s2 = inlined_call_operand.hbm [shape: f32[256,384], index: 2, kind: input, shape index: {}]
  %s3 = inlined_call_operand.hbm [shape: f32[256,384], index: 3, kind: input, shape index: {}]
  %s4 = inlined_call_operand.vmem [shape: f32[1,256], index: 4, kind: input, shape index: {}]
  %s5 = inlined_call_operand.hbm [shape: f32[8,256], index: 5, kind: output, shape index: {0}]
  %s6 = inlined_call_operand.hbm [shape: f32[256,384], index: 6, kind: output, shape index: {1}]
  %7 = xla_tuple %s5, %s6
  %s8 = sld [smem:[#allocation0]]
  $region85: #{tpu_custom_call.1} parent=0
    _
  %s10 = ssub.s32 1, %s8
  %s11 = scalar_select 0, %s10, %s8
  $region1: #{tpu_custom_call.1} parent=0
    #allocation3 [shape = 'u8[8192]{0}', space=vmem, size = 0x2000, scoped, tag = 'input window, operand 0']
    #allocation4 [shape = 's32[2]{0}', space=sflag, size = 0x8, scoped, tag = 'scoped memory for tpu_custom_call.1']
    #allocation5 [shape = 's32[2]{0}', space=sflag, size = 0x8, scoped, tag = 'scoped memory for tpu_custom_call.1']
    #allocation6 [shape = 'u8[131072]{0}', space=vmem, size = 0x20000, scoped, tag = 'input window, operand 1']
    #allocation7 [shape = 's32[2]{0}', space=sflag, size = 0x8, scoped, tag = 'scoped memory for tpu_custom_call.1']
    #allocation8 [shape = 'u8[131072]{0}', space=vmem, size = 0x20000, scoped, tag = 'input window, operand 2']
    #allocation9 [shape = 'u8[131072]{0}', space=vmem, size = 0x20000, scoped, tag = 'input window, operand 3']
    #allocation10 [shape = 's32[2]{0}', space=sflag, size = 0x8, scoped, tag = 'scoped memory for tpu_custom_call.1']
    #allocation11 [shape = 'u8[8192]{0}', space=vmem, size = 0x2000, scoped, tag = 'output window, operand 0']
    #allocation12 [shape = 'u8[131072]{0}', space=vmem, size = 0x20000, scoped, tag = 'output window, operand 1']
    #allocation13 [shape = 's32[2]{0}', space=sflag, size = 0x8, scoped, tag = 'scoped memory for tpu_custom_call.1']
    %12 = vsyncpa [#allocation4], 0
    %s13 = scalar_lea.sflag [#allocation4], 1
    %14 = vsyncpa %s13, 0
    %15 = vsyncpa [#allocation7], 0
    %s16 = scalar_lea.sflag [#allocation7], 1
    %17 = vsyncpa %s16, 0
    %18 = vsyncpa [#allocation10], 0
    %s19 = scalar_lea.sflag [#allocation10], 1
    %20 = vsyncpa %s19, 0
    %21 = vsyncpa [#allocation5], 0
    %s22 = scalar_lea.sflag [#allocation5], 1
    %23 = vsyncpa %s22, 0
    %24 = vsyncpa [#allocation13], 0
    %s25 = scalar_lea.sflag [#allocation13], 1
    %26 = vsyncpa %s25, 0
    loop: start=0, step=1, limit=8
    $region2: #{tpu_custom_call.1} parent=1 // loop_pre_header
      _
    $region3: #{tpu_custom_call.1} parent=1 // loop_header
      %s28 = sphi 0, %s32
      %p29 = scmp.ge.s32.totalorder %s28, 8
      %s35 = sphi 0, %s47
      %s36 = sphi 0, %s43
      %s37 = sphi 0, %s35
      %s38 = sphi 0, %s36
      %s39 = sphi 0, %s37
      %s40 = sphi 0, %s38
      %s50 = sphi 0, %s52
      %s53 = sphi 0, %s50
      %s54 = sphi 0, %s53
      %s70 = sphi 0, %s54
      %s78 = sphi 0, %s80
      %s81 = sphi 0, %s78
      %s82 = sphi 0, %s81
      %s98 = sphi 0, %s82
      %s106 = sphi 0, %s108
      %s109 = sphi 0, %s106
      %s110 = sphi 0, %s109
      %s126 = sphi 0, %s110
      %s134 = sphi 0, %s136
      %s137 = sphi 0, %s134
      %s138 = sphi 0, %s137
      %s154 = sphi 0, %s138
      %s160 = sphi 0, %s162
      %s163 = sphi 0, %s160
      %s164 = sphi 0, %s163
      %s180 = sphi 0, %s164
      %s186 = sphi 0, %s188
      %s189 = sphi 0, %s186
      %s190 = sphi 0, %s189
      %s206 = sphi 0, %s190
      %s214 = sphi 0, %s216
      %s217 = sphi 0, %s214
      %s218 = sphi 0, %s217
      %s234 = sphi 0, %s218
    $region4: #{tpu_custom_call.1} parent=1 // loop_header_branch
      %31 = sbr.rel (%p29) target = $region8
    $region5: #{tpu_custom_call.1} parent=1 // loop_body
      %s33 = ssub.s32 %s28, 1
      %s34 = ssub.s32 %s28, 2
      %s41 = sadd.s32 1, %s36
      %p42 = scmp.ge.s32.totalorder %s41, 3
      %s43 = scalar_select %p42, 0, %s41
      %s44 = sadd.s32 1, %s35
      %s45 = scalar_select %p42, %s44, %s35
      %p46 = scmp.ge.s32.totalorder %s45, 2
      %s47 = scalar_select %p46, 0, %s45
      %s48 = ssub.s32 %s36, %s43
      %p49 = scmp.eq.s32.totalorder %s48, 0
      %s51 = sadd.s32 %s50, 1
      %s52 = scalar_select %p49, %s50, %s51
      %p55 = pneg %p49
      %p56 = scmp.eq.s32.totalorder %s28, 5
      %p57 = por %p55, %p56
      %p58 = scmp.ne.s32.totalorder %s50, %s53
      %p59 = scmp.eq.s32.totalorder %s28, 0
      %p60 = por %p58, %p59
      %p61 = scmp.ne.s32.totalorder %s50, %s53
      %p62 = scmp.eq.s32.totalorder %s33, 5
      %p63 = por %p61, %p62
      %p64 = scmp.ne.s32.totalorder %s53, %s54
      %p65 = scmp.eq.s32.totalorder %s33, 0
      %p66 = por %p64, %p65
      %p67 = scmp.ne.s32.totalorder %s53, %s54
      %p68 = scmp.eq.s32.totalorder %s34, 5
      %p69 = por %p67, %p68
      %p71 = scmp.ne.s32.totalorder %s54, %s70
      %p72 = scmp.eq.s32.totalorder %s34, 0
      %p73 = por %p71, %p72
      %s74 = ssub.s32 %s35, %s47
      %s75 = ssub.s32 %s36, %s43
      %s76 = sor.u32 %s74, %s75
      %p77 = scmp.eq.s32.totalorder %s76, 0
      %s79 = sadd.s32 %s78, 1
      %s80 = scalar_select %p77, %s78, %s79
      %p83 = pneg %p77
      %p84 = scmp.eq.s32.totalorder %s28, 5
      %p85 = por %p83, %p84
      %p86 = scmp.ne.s32.totalorder %s78, %s81
      %p87 = scmp.eq.s32.totalorder %s28, 0
      %p88 = por %p86, %p87
      %p89 = scmp.ne.s32.totalorder %s78, %s81
      %p90 = scmp.eq.s32.totalorder %s33, 5
      %p91 = por %p89, %p90
      %p92 = scmp.ne.s32.totalorder %s81, %s82
      %p93 = scmp.eq.s32.totalorder %s33, 0
      %p94 = por %p92, %p93
      %p95 = scmp.ne.s32.totalorder %s81, %s82
      %p96 = scmp.eq.s32.totalorder %s34, 5
      %p97 = por %p95, %p96
      %p99 = scmp.ne.s32.totalorder %s82, %s98
      %p100 = scmp.eq.s32.totalorder %s34, 0
      %p101 = por %p99, %p100
      %s102 = ssub.s32 %s35, %s47
      %s103 = ssub.s32 %s36, %s43
      %s104 = sor.u32 %s102, %s103
      %p105 = scmp.eq.s32.totalorder %s104, 0
      %s107 = sadd.s32 %s106, 1
      %s108 = scalar_select %p105, %s106, %s107
      %p111 = pneg %p105
      %p112 = scmp.eq.s32.totalorder %s28, 5
      %p113 = por %p111, %p112
      %p114 = scmp.ne.s32.totalorder %s106, %s109
      %p115 = scmp.eq.s32.totalorder %s28, 0
      %p116 = por %p114, %p115
      %p117 = scmp.ne.s32.totalorder %s106, %s109
      %p118 = scmp.eq.s32.totalorder %s33, 5
      %p119 = por %p117, %p118
      %p120 = scmp.ne.s32.totalorder %s109, %s110
      %p121 = scmp.eq.s32.totalorder %s33, 0
      %p122 = por %p120, %p121
      %p123 = scmp.ne.s32.totalorder %s109, %s110
      %p124 = scmp.eq.s32.totalorder %s34, 5
      %p125 = por %p123, %p124
      %p127 = scmp.ne.s32.totalorder %s110, %s126
      %p128 = scmp.eq.s32.totalorder %s34, 0
      %p129 = por %p127, %p128
      %s130 = ssub.s32 %s35, %s47
      %s131 = ssub.s32 %s36, %s43
      %s132 = sor.u32 %s130, %s131
      %p133 = scmp.eq.s32.totalorder %s132, 0
      %s135 = sadd.s32 %s134, 1
      %s136 = scalar_select %p133, %s134, %s135
      %p139 = pneg %p133
      %p140 = scmp.eq.s32.totalorder %s28, 5
      %p141 = por %p139, %p140
      %p142 = scmp.ne.s32.totalorder %s134, %s137
      %p143 = scmp.eq.s32.totalorder %s28, 0
      %p144 = por %p142, %p143
      %p145 = scmp.ne.s32.totalorder %s134, %s137
      %p146 = scmp.eq.s32.totalorder %s33, 5
      %p147 = por %p145, %p146
      %p148 = scmp.ne.s32.totalorder %s137, %s138
      %p149 = scmp.eq.s32.totalorder %s33, 0
      %p150 = por %p148, %p149
      %p151 = scmp.ne.s32.totalorder %s137, %s138
      %p152 = scmp.eq.s32.totalorder %s34, 5
      %p153 = por %p151, %p152
      %p155 = scmp.ne.s32.totalorder %s138, %s154
      %p156 = scmp.eq.s32.totalorder %s34, 0
      %p157 = por %p155, %p156
      %s158 = ssub.s32 %s35, %s47
      %p159 = scmp.eq.s32.totalorder %s158, 0
      %s161 = sadd.s32 %s160, 1
      %s162 = scalar_select %p159, %s160, %s161
      %p165 = pneg %p159
      %p166 = scmp.eq.s32.totalorder %s28, 5
      %p167 = por %p165, %p166
      %p168 = scmp.ne.s32.totalorder %s160, %s163
      %p169 = scmp.eq.s32.totalorder %s28, 0
      %p170 = por %p168, %p169
      %p171 = scmp.ne.s32.totalorder %s160, %s163
      %p172 = scmp.eq.s32.totalorder %s33, 5
      %p173 = por %p171, %p172
      %p174 = scmp.ne.s32.totalorder %s163, %s164
      %p175 = scmp.eq.s32.totalorder %s33, 0
      %p176 = por %p174, %p175
      %p177 = scmp.ne.s32.totalorder %s163, %s164
      %p178 = scmp.eq.s32.totalorder %s34, 5
      %p179 = por %p177, %p178
      %p181 = scmp.ne.s32.totalorder %s164, %s180
      %p182 = scmp.eq.s32.totalorder %s34, 0
      %p183 = por %p181, %p182
      %s184 = ssub.s32 %s35, %s47
      %p185 = scmp.eq.s32.totalorder %s184, 0
      %s187 = sadd.s32 %s186, 1
      %s188 = scalar_select %p185, %s186, %s187
      %p191 = pneg %p185
      %p192 = scmp.eq.s32.totalorder %s28, 5
      %p193 = por %p191, %p192
      %p194 = scmp.ne.s32.totalorder %s186, %s189
      %p195 = scmp.eq.s32.totalorder %s28, 0
      %p196 = por %p194, %p195
      %p197 = scmp.ne.s32.totalorder %s186, %s189
      %p198 = scmp.eq.s32.totalorder %s33, 5
      %p199 = por %p197, %p198
      %p200 = scmp.ne.s32.totalorder %s189, %s190
      %p201 = scmp.eq.s32.totalorder %s33, 0
      %p202 = por %p200, %p201
      %p203 = scmp.ne.s32.totalorder %s189, %s190
      %p204 = scmp.eq.s32.totalorder %s34, 5
      %p205 = por %p203, %p204
      %p207 = scmp.ne.s32.totalorder %s190, %s206
      %p208 = scmp.eq.s32.totalorder %s34, 0
      %p209 = por %p207, %p208
      %s210 = ssub.s32 %s35, %s47
      %s211 = ssub.s32 %s36, %s43
      %s212 = sor.u32 %s210, %s211
      %p213 = scmp.eq.s32.totalorder %s212, 0
      %s215 = sadd.s32 %s214, 1
      %s216 = scalar_select %p213, %s214, %s215
      %p219 = pneg %p213
      %p220 = scmp.eq.s32.totalorder %s28, 5
      %p221 = por %p219, %p220
      %p222 = scmp.ne.s32.totalorder %s214, %s217
      %p223 = scmp.eq.s32.totalorder %s28, 0
      %p224 = por %p222, %p223
      %p225 = scmp.ne.s32.totalorder %s214, %s217
      %p226 = scmp.eq.s32.totalorder %s33, 5
      %p227 = por %p225, %p226
      %p228 = scmp.ne.s32.totalorder %s217, %s218
      %p229 = scmp.eq.s32.totalorder %s33, 0
      %p230 = por %p228, %p229
      %p231 = scmp.ne.s32.totalorder %s217, %s218
      %p232 = scmp.eq.s32.totalorder %s34, 5
      %p233 = por %p231, %p232
      %p235 = scmp.ne.s32.totalorder %s218, %s234
      %p236 = scmp.eq.s32.totalorder %s34, 0
      %p237 = por %p235, %p236
      %p238 = scmp.le.s32.totalorder 1, %s28
      %p239 = scmp.lt.s32.totalorder %s28, 7
      %p240 = pnand %p238, %p239
      %p241 = pneg %p240
      // Predicated region
      $region9: #{tpu_custom_call.1} parent=5 // pred_check
        _
      $region10: #{tpu_custom_call.1} parent=5 // pred_check_branch
        %243 = sbr.rel (%p240) target = $region12
      $region11: #{tpu_custom_call.1} parent=5 // pred_region
        %s244 = ssub.s32 %s28, 1
      $region12: #{tpu_custom_call.1} parent=5 // pred_fallthru
        _
      %p245 = scmp.lt.s32.totalorder %s28, 6
      // Predicated region
      $region13: #{tpu_custom_call.1} parent=5 // pred_check
        %p246 = pneg %p245
      $region14: #{tpu_custom_call.1} parent=5 // pred_check_branch
        %248 = sbr.rel (%p246) target = $region16
      $region15: #{tpu_custom_call.1} parent=5 // pred_region
        // Predicated region
        $region17: #{tpu_custom_call.1} parent=15 // pred_check
          %p249 = pneg %p60
        $region18: #{tpu_custom_call.1} parent=15 // pred_check_branch
          %251 = sbr.rel (%p249) target = $region20
        $region19: #{tpu_custom_call.1} parent=15 // pred_region
          %s252 = sand.u32 %s50, 1
          %s253 = scalar_lea.sflag [#allocation4], %s252
          %s254 = sand.u32 %s50, 1
          %s255 = smul.addr %s254, 8
          %s256 = scalar_lea.vmem [#allocation3], %s255
          %s258 = ssub.s32 128, 128
          %259 = vsyncadd %s253, %s258
          %s260 = smul.addr %s36, 128
          %s261 = scalar_lea.hbm %s0, %s260
          %s263 = sshll.u32 %s256, 4
          %s264 = int_to_ptr.vmem [resolvable:$true] %s263
          %266 = dma.hbm_to_vmem [thread:$0]  %s261, 128, %s264, %s253
        $region20: #{tpu_custom_call.1} parent=15 // pred_fallthru
          _
        // Predicated region
        $region21: #{tpu_custom_call.1} parent=15 // pred_check
          %p267 = pneg %p88
        $region22: #{tpu_custom_call.1} parent=15 // pred_check_branch
          %269 = sbr.rel (%p267) target = $region24
        $region23: #{tpu_custom_call.1} parent=15 // pred_region
          %s270 = sand.u32 %s28, 1
          %s271 = scalar_lea.sflag [#allocation7], %s270
          %s272 = sand.u32 %s78, 1
          %s273 = smul.addr %s272, 128
          %s274 = scalar_lea.vmem [#allocation6], %s273
          %s275 = smul.u32 16, %s35
          %s277 = ssub.s32 2048, 2048
          %278 = vsyncadd %s271, %s277
          %s279 = smul.addr %s275, 3
          %s280 = sadd.s32 %s36, %s279
          %s281 = smul.addr %s280, 128
          %s282 = scalar_lea.hbm %s1, %s281
          %s283 = sshll.u32 %s274, 4
          %s284 = int_to_ptr.vmem [resolvable:$true] %s283
          %289 = dma.hbm_to_vmem [thread:$0]  %s282, 2048, %s284, %s271, 384, 128, 8
        $region24: #{tpu_custom_call.1} parent=15 // pred_fallthru
          _
        // Predicated region
        $region25: #{tpu_custom_call.1} parent=15 // pred_check
          %p290 = pneg %p116
        $region26: #{tpu_custom_call.1} parent=15 // pred_check_branch
          %292 = sbr.rel (%p290) target = $region28
        $region27: #{tpu_custom_call.1} parent=15 // pred_region
          %s293 = sand.u32 %s28, 1
          %s294 = scalar_lea.sflag [#allocation7], %s293
          %s295 = sand.u32 %s106, 1
          %s296 = smul.addr %s295, 128
          %s297 = scalar_lea.vmem [#allocation8], %s296
          %s298 = smul.u32 16, %s35
          %s300 = ssub.s32 2048, 2048
          %301 = vsyncadd %s294, %s300
          %s302 = smul.addr %s298, 3
          %s303 = sadd.s32 %s36, %s302
          %s304 = smul.addr %s303, 128
          %s305 = scalar_lea.hbm %s2, %s304
          %s306 = sshll.u32 %s297, 4
          %s307 = int_to_ptr.vmem [resolvable:$true] %s306
          %312 = dma.hbm_to_vmem [thread:$0]  %s305, 2048, %s307, %s294, 384, 128, 8
        $region28: #{tpu_custom_call.1} parent=15 // pred_fallthru
          _
        // Predicated region
        $region29: #{tpu_custom_call.1} parent=15 // pred_check
          %p313 = pneg %p144
        $region30: #{tpu_custom_call.1} parent=15 // pred_check_branch
          %315 = sbr.rel (%p313) target = $region32
        $region31: #{tpu_custom_call.1} parent=15 // pred_region
          %s316 = sand.u32 %s134, 1
          %s317 = scalar_lea.sflag [#allocation10], %s316
          %s318 = sand.u32 %s134, 1
          %s319 = smul.addr %s318, 128
          %s320 = scalar_lea.vmem [#allocation9], %s319
          %s321 = smul.u32 16, %s35
          %s323 = ssub.s32 2048, 2048
          %324 = vsyncadd %s317, %s323
          %s325 = smul.addr %s321, 3
          %s326 = sadd.s32 %s36, %s325
          %s327 = smul.addr %s326, 128
          %s328 = scalar_lea.hbm %s3, %s327
          %s329 = sshll.u32 %s320, 4
          %s330 = int_to_ptr.vmem [resolvable:$true] %s329
          %335 = dma.hbm_to_vmem [thread:$0]  %s328, 2048, %s330, %s317, 384, 128, 8
        $region32: #{tpu_custom_call.1} parent=15 // pred_fallthru
          _
        // Predicated region
        $region33: #{tpu_custom_call.1} parent=15 // pred_check
          %p336 = pneg %p170
        $region34: #{tpu_custom_call.1} parent=15 // pred_check_branch
          %338 = sbr.rel (%p336) target = $region36
        $region35: #{tpu_custom_call.1} parent=15 // pred_region
          %p339 = scmp.lt.s32.totalorder %s35, 1
          %s340 = scalar_select %p339, %s35, 1
          %s341 = scalar_lea.vmem %s4, %s340
        $region36: #{tpu_custom_call.1} parent=15 // pred_fallthru
          _
      $region16: #{tpu_custom_call.1} parent=5 // pred_fallthru
        _
      %p342 = scmp.le.s32.totalorder 1, %s28
      %p343 = scmp.lt.s32.totalorder %s28, 7
      %p344 = pnand %p342, %p343
      %p345 = pneg %p344
      // Predicated region
      $region37: #{tpu_custom_call.1} parent=5 // pred_check
        _
      $region38: #{tpu_custom_call.1} parent=5 // pred_check_branch
        %347 = sbr.rel (%p344) target = $region40
      $region39: #{tpu_custom_call.1} parent=5 // pred_region
        %s348 = ssub.s32 %s28, 1
        %s349 = sand.u32 %s53, 1
        %s350 = scalar_lea.sflag [#allocation4], %s349
        %s351 = sand.u32 %s53, 1
        %s352 = smul.addr %s351, 8
        %s353 = scalar_lea.vmem [#allocation3], %s352
        // Predicated region
        $region41: #{tpu_custom_call.1} parent=39 // pred_check
          %p354 = pneg %p66
        $region42: #{tpu_custom_call.1} parent=39 // pred_check_branch
          %356 = sbr.rel (%p354) target = $region44
        $region43: #{tpu_custom_call.1} parent=39 // pred_region
          %357 = dma.done %s350, 128
        $region44: #{tpu_custom_call.1} parent=39 // pred_fallthru
          _
        %s358 = sand.u32 %s33, 1
        %s359 = scalar_lea.sflag [#allocation7], %s358
        %s360 = sand.u32 %s81, 1
        %s361 = smul.addr %s360, 128
        %s362 = scalar_lea.vmem [#allocation6], %s361
        // Predicated region
        $region45: #{tpu_custom_call.1} parent=39 // pred_check
          %p363 = pneg %p94
        $region46: #{tpu_custom_call.1} parent=39 // pred_check_branch
          %365 = sbr.rel (%p363) target = $region48
        $region47: #{tpu_custom_call.1} parent=39 // pred_region
          %366 = dma.done %s359, 2048
        $region48: #{tpu_custom_call.1} parent=39 // pred_fallthru
          _
        %s367 = sand.u32 %s33, 1
        %s368 = scalar_lea.sflag [#allocation7], %s367
        %s369 = sand.u32 %s109, 1
        %s370 = smul.addr %s369, 128
        %s371 = scalar_lea.vmem [#allocation8], %s370
        // Predicated region
        $region49: #{tpu_custom_call.1} parent=39 // pred_check
          %p372 = pneg %p122
        $region50: #{tpu_custom_call.1} parent=39 // pred_check_branch
          %374 = sbr.rel (%p372) target = $region52
        $region51: #{tpu_custom_call.1} parent=39 // pred_region
          %375 = dma.done %s368, 2048
        $region52: #{tpu_custom_call.1} parent=39 // pred_fallthru
          _
        %s376 = sand.u32 %s137, 1
        %s377 = scalar_lea.sflag [#allocation10], %s376
        %s378 = sand.u32 %s137, 1
        %s379 = smul.addr %s378, 128
        %s380 = scalar_lea.vmem [#allocation9], %s379
        // Predicated region
        $region53: #{tpu_custom_call.1} parent=39 // pred_check
          %p381 = pneg %p150
        $region54: #{tpu_custom_call.1} parent=39 // pred_check_branch
          %383 = sbr.rel (%p381) target = $region56
        $region55: #{tpu_custom_call.1} parent=39 // pred_region
          %384 = dma.done %s377, 2048
        $region56: #{tpu_custom_call.1} parent=39 // pred_fallthru
          _
        %s385 = sand.u32 %s53, 1
        %s386 = scalar_lea.sflag [#allocation4], %s385
        %s387 = sand.u32 %s53, 1
        %s388 = smul.addr %s387, 8
        %s389 = scalar_lea.vmem [#allocation3], %s388
        %p390 = pneg %p66
        %p391 = pneg %p63
        %s392 = sand.u32 %s33, 1
        %s393 = scalar_lea.sflag [#allocation7], %s392
        %s394 = sand.u32 %s81, 1
        %s395 = smul.addr %s394, 128
        %s396 = scalar_lea.vmem [#allocation6], %s395
        %p397 = pneg %p94
        %p398 = pneg %p91
        %s399 = sand.u32 %s33, 1
        %s400 = scalar_lea.sflag [#allocation7], %s399
        %s401 = sand.u32 %s109, 1
        %s402 = smul.addr %s401, 128
        %s403 = scalar_lea.vmem [#allocation8], %s402
        %p404 = pneg %p122
        %p405 = pneg %p119
        %s406 = sand.u32 %s137, 1
        %s407 = scalar_lea.sflag [#allocation10], %s406
        %s408 = sand.u32 %s137, 1
        %s409 = smul.addr %s408, 128
        %s410 = scalar_lea.vmem [#allocation9], %s409
        %p411 = pneg %p150
        %p412 = pneg %p147
        %p413 = scmp.lt.s32.totalorder %s37, 1
        %s414 = scalar_select %p413, %s37, 1
        %s415 = scalar_lea.vmem %s4, %s414
        %p416 = pneg %p176
        %p417 = pneg %p173
        %p418 = pneg %p202
        %p419 = pneg %p199
        %s420 = sand.u32 %s189, 1
        %s421 = scalar_lea.sflag [#allocation5], %s420
        %s422 = sand.u32 %s189, 1
        %s423 = smul.addr %s422, 8
        %s424 = scalar_lea.vmem [#allocation11], %s423
        %p425 = pneg %p230
        %p426 = pneg %p227
        %s427 = sand.u32 %s217, 1
        %s428 = scalar_lea.sflag [#allocation13], %s427
        %s429 = sand.u32 %s217, 1
        %s430 = smul.addr %s429, 128
        %s431 = scalar_lea.vmem [#allocation12], %s430
        %s432 = smul.u32 16, %s37
        %s433 = smul.u32 16, %s37
        %s434 = smul.u32 16, %s37
        %p435 = scmp.lt.s32.totalorder %s37, 1
        %s436 = scalar_select %p435, %s37, 1
        %s437 = scalar_lea.vmem %s4, %s436
        %s438 = smul.u32 16, %s37
        %v439 = vld [vmem:[%s380] sm:$0xff]
        %v440 = vld [vmem:[%s380 + $0x8] sm:$0xff]
        %v441 = vld [vmem:[%s380 + $0x10] sm:$0xff]
        %v442 = vld [vmem:[%s380 + $0x18] sm:$0xff]
        %v443 = vld [vmem:[%s380 + $0x20] sm:$0xff]
        %v444 = vld [vmem:[%s380 + $0x28] sm:$0xff]
        %v445 = vld [vmem:[%s380 + $0x30] sm:$0xff]
        %v446 = vld [vmem:[%s380 + $0x38] sm:$0xff]
        %v447 = vld [vmem:[%s380 + $0x40] sm:$0xff]
        %v448 = vld [vmem:[%s380 + $0x48] sm:$0xff]
        %v449 = vld [vmem:[%s380 + $0x50] sm:$0xff]
        %v450 = vld [vmem:[%s380 + $0x58] sm:$0xff]
        %v451 = vld [vmem:[%s380 + $0x60] sm:$0xff]
        %v452 = vld [vmem:[%s380 + $0x68] sm:$0xff]
        %v453 = vld [vmem:[%s380 + $0x70] sm:$0xff]
        %v454 = vld [vmem:[%s380 + $0x78] sm:$0xff]
        %vm455 = vcmp.gt.f32.partialorder %v439, 20.0
        %vm456 = vcmp.gt.f32.partialorder %v440, 20.0
        %vm457 = vcmp.gt.f32.partialorder %v441, 20.0
        %vm458 = vcmp.gt.f32.partialorder %v442, 20.0
        %vm459 = vcmp.gt.f32.partialorder %v443, 20.0
        %vm460 = vcmp.gt.f32.partialorder %v444, 20.0
        %vm461 = vcmp.gt.f32.partialorder %v445, 20.0
        %vm462 = vcmp.gt.f32.partialorder %v446, 20.0
        %vm463 = vcmp.gt.f32.partialorder %v447, 20.0
        %vm464 = vcmp.gt.f32.partialorder %v448, 20.0
        %vm465 = vcmp.gt.f32.partialorder %v449, 20.0
        %vm466 = vcmp.gt.f32.partialorder %v450, 20.0
        %vm467 = vcmp.gt.f32.partialorder %v451, 20.0
        %vm468 = vcmp.gt.f32.partialorder %v452, 20.0
        %vm469 = vcmp.gt.f32.partialorder %v453, 20.0
        %vm470 = vcmp.gt.f32.partialorder %v454, 20.0
        %v471 = vmin.f32 %v439, 20.0
        %v472 = vmin.f32 %v440, 20.0
        %v473 = vmin.f32 %v441, 20.0
        %v474 = vmin.f32 %v442, 20.0
        %v475 = vmin.f32 %v443, 20.0
        %v476 = vmin.f32 %v444, 20.0
        %v477 = vmin.f32 %v445, 20.0
        %v478 = vmin.f32 %v446, 20.0
        %v479 = vmin.f32 %v447, 20.0
        %v480 = vmin.f32 %v448, 20.0
        %v481 = vmin.f32 %v449, 20.0
        %v482 = vmin.f32 %v450, 20.0
        %v483 = vmin.f32 %v451, 20.0
        %v484 = vmin.f32 %v452, 20.0
        %v485 = vmin.f32 %v453, 20.0
        %v486 = vmin.f32 %v454, 20.0
        %v487 = vmul.f32 %v471, 1.442695
        %v488 = vpow.pop %v487
        %v489 = vmul.f32 %v472, 1.442695
        %v490 = vpow.pop %v489
        %v491 = vmul.f32 %v473, 1.442695
        %v492 = vpow.pop %v491
        %v493 = vmul.f32 %v474, 1.442695
        %v494 = vpow.pop %v493
        %v495 = vmul.f32 %v475, 1.442695
        %v496 = vpow.pop %v495
        %v497 = vmul.f32 %v476, 1.442695
        %v498 = vpow.pop %v497
        %v499 = vmul.f32 %v477, 1.442695
        %v500 = vpow.pop %v499
        %v501 = vmul.f32 %v478, 1.442695
        %v502 = vpow.pop %v501
        %v503 = vmul.f32 %v479, 1.442695
        %v504 = vpow.pop %v503
        %v505 = vmul.f32 %v480, 1.442695
        %v506 = vpow.pop %v505
        %v507 = vmul.f32 %v481, 1.442695
        %v508 = vpow.pop %v507
        %v509 = vmul.f32 %v482, 1.442695
        %v510 = vpow.pop %v509
        %v511 = vmul.f32 %v483, 1.442695
        %v512 = vpow.pop %v511
        %v513 = vmul.f32 %v484, 1.442695
        %v514 = vpow.pop %v513
        %v515 = vmul.f32 %v485, 1.442695
        %v516 = vpow.pop %v515
        %v517 = vmul.f32 %v486, 1.442695
        %v518 = vpow.pop %v517
        %v519 = vadd.f32 %v488, 1.0
        %v520 = vlog2.pop %v519
        %v521 = vmul.f32 %v520, 0.6931472
        %v522 = vmul.f32 -0.5, %v488
        %v523 = vadd.f32 %v522, 1.0
        %v524 = vmul.f32 %v523, %v488
        %v525 = vand.u32 2147483647, %v488
        %vm526 = vcmp.lt.f32.partialorder %v525, 0.0004427343
        %v527 = vsel %vm526, %v524, %v521
        %v528 = vadd.f32 %v490, 1.0
        %v529 = vlog2.pop %v528
        %v530 = vmul.f32 %v529, 0.6931472
        %v531 = vmul.f32 -0.5, %v490
        %v532 = vadd.f32 %v531, 1.0
        %v533 = vmul.f32 %v532, %v490
        %v534 = vand.u32 2147483647, %v490
        %vm535 = vcmp.lt.f32.partialorder %v534, 0.0004427343
        %v536 = vsel %vm535, %v533, %v530
        %v537 = vadd.f32 %v492, 1.0
        %v538 = vlog2.pop %v537
        %v539 = vmul.f32 %v538, 0.6931472
        %v540 = vmul.f32 -0.5, %v492
        %v541 = vadd.f32 %v540, 1.0
        %v542 = vmul.f32 %v541, %v492
        %v543 = vand.u32 2147483647, %v492
        %vm544 = vcmp.lt.f32.partialorder %v543, 0.0004427343
        %v545 = vsel %vm544, %v542, %v539
        %v546 = vadd.f32 %v494, 1.0
        %v547 = vlog2.pop %v546
        %v548 = vmul.f32 %v547, 0.6931472
        %v549 = vmul.f32 -0.5, %v494
        %v550 = vadd.f32 %v549, 1.0
        %v551 = vmul.f32 %v550, %v494
        %v552 = vand.u32 2147483647, %v494
        %vm553 = vcmp.lt.f32.partialorder %v552, 0.0004427343
        %v554 = vsel %vm553, %v551, %v548
        %v555 = vadd.f32 %v496, 1.0
        %v556 = vlog2.pop %v555
        %v557 = vmul.f32 %v556, 0.6931472
        %v558 = vmul.f32 -0.5, %v496
        %v559 = vadd.f32 %v558, 1.0
        %v560 = vmul.f32 %v559, %v496
        %v561 = vand.u32 2147483647, %v496
        %vm562 = vcmp.lt.f32.partialorder %v561, 0.0004427343
        %v563 = vsel %vm562, %v560, %v557
        %v564 = vadd.f32 %v498, 1.0
        %v565 = vlog2.pop %v564
        %v566 = vmul.f32 %v565, 0.6931472
        %v567 = vmul.f32 -0.5, %v498
        %v568 = vadd.f32 %v567, 1.0
        %v569 = vmul.f32 %v568, %v498
        %v570 = vand.u32 2147483647, %v498
        %vm571 = vcmp.lt.f32.partialorder %v570, 0.0004427343
        %v572 = vsel %vm571, %v569, %v566
        %v573 = vadd.f32 %v500, 1.0
        %v574 = vlog2.pop %v573
        %v575 = vmul.f32 %v574, 0.6931472
        %v576 = vmul.f32 -0.5, %v500
        %v577 = vadd.f32 %v576, 1.0
        %v578 = vmul.f32 %v577, %v500
        %v579 = vand.u32 2147483647, %v500
        %vm580 = vcmp.lt.f32.partialorder %v579, 0.0004427343
        %v581 = vsel %vm580, %v578, %v575
        %v582 = vadd.f32 %v502, 1.0
        %v583 = vlog2.pop %v582
        %v584 = vmul.f32 %v583, 0.6931472
        %v585 = vmul.f32 -0.5, %v502
        %v586 = vadd.f32 %v585, 1.0
        %v587 = vmul.f32 %v586, %v502
        %v588 = vand.u32 2147483647, %v502
        %vm589 = vcmp.lt.f32.partialorder %v588, 0.0004427343
        %v590 = vsel %vm589, %v587, %v584
        %v591 = vadd.f32 %v504, 1.0
        %v592 = vlog2.pop %v591
        %v593 = vmul.f32 %v592, 0.6931472
        %v594 = vmul.f32 -0.5, %v504
        %v595 = vadd.f32 %v594, 1.0
        %v596 = vmul.f32 %v595, %v504
        %v597 = vand.u32 2147483647, %v504
        %vm598 = vcmp.lt.f32.partialorder %v597, 0.0004427343
        %v599 = vsel %vm598, %v596, %v593
        %v600 = vadd.f32 %v506, 1.0
        %v601 = vlog2.pop %v600
        %v602 = vmul.f32 %v601, 0.6931472
        %v603 = vmul.f32 -0.5, %v506
        %v604 = vadd.f32 %v603, 1.0
        %v605 = vmul.f32 %v604, %v506
        %v606 = vand.u32 2147483647, %v506
        %vm607 = vcmp.lt.f32.partialorder %v606, 0.0004427343
        %v608 = vsel %vm607, %v605, %v602
        %v609 = vadd.f32 %v508, 1.0
        %v610 = vlog2.pop %v609
        %v611 = vmul.f32 %v610, 0.6931472
        %v612 = vmul.f32 -0.5, %v508
        %v613 = vadd.f32 %v612, 1.0
        %v614 = vmul.f32 %v613, %v508
        %v615 = vand.u32 2147483647, %v508
        %vm616 = vcmp.lt.f32.partialorder %v615, 0.0004427343
        %v617 = vsel %vm616, %v614, %v611
        %v618 = vadd.f32 %v510, 1.0
        %v619 = vlog2.pop %v618
        %v620 = vmul.f32 %v619, 0.6931472
        %v621 = vmul.f32 -0.5, %v510
        %v622 = vadd.f32 %v621, 1.0
        %v623 = vmul.f32 %v622, %v510
        %v624 = vand.u32 2147483647, %v510
        %vm625 = vcmp.lt.f32.partialorder %v624, 0.0004427343
        %v626 = vsel %vm625, %v623, %v620
        %v627 = vadd.f32 %v512, 1.0
        %v628 = vlog2.pop %v627
        %v629 = vmul.f32 %v628, 0.6931472
        %v630 = vmul.f32 -0.5, %v512
        %v631 = vadd.f32 %v630, 1.0
        %v632 = vmul.f32 %v631, %v512
        %v633 = vand.u32 2147483647, %v512
        %vm634 = vcmp.lt.f32.partialorder %v633, 0.0004427343
        %v635 = vsel %vm634, %v632, %v629
        %v636 = vadd.f32 %v514, 1.0
        %v637 = vlog2.pop %v636
        %v638 = vmul.f32 %v637, 0.6931472
        %v639 = vmul.f32 -0.5, %v514
        %v640 = vadd.f32 %v639, 1.0
        %v641 = vmul.f32 %v640, %v514
        %v642 = vand.u32 2147483647, %v514
        %vm643 = vcmp.lt.f32.partialorder %v642, 0.0004427343
        %v644 = vsel %vm643, %v641, %v638
        %v645 = vadd.f32 %v516, 1.0
        %v646 = vlog2.pop %v645
        %v647 = vmul.f32 %v646, 0.6931472
        %v648 = vmul.f32 -0.5, %v516
        %v649 = vadd.f32 %v648, 1.0
        %v650 = vmul.f32 %v649, %v516
        %v651 = vand.u32 2147483647, %v516
        %vm652 = vcmp.lt.f32.partialorder %v651, 0.0004427343
        %v653 = vsel %vm652, %v650, %v647
        %v654 = vadd.f32 %v518, 1.0
        %v655 = vlog2.pop %v654
        %v656 = vmul.f32 %v655, 0.6931472
        %v657 = vmul.f32 -0.5, %v518
        %v658 = vadd.f32 %v657, 1.0
        %v659 = vmul.f32 %v658, %v518
        %v660 = vand.u32 2147483647, %v518
        %vm661 = vcmp.lt.f32.partialorder %v660, 0.0004427343
        %v662 = vsel %vm661, %v659, %v656
        %v663 = vsel %vm455, %v439, %v527
        %v664 = vsel %vm456, %v440, %v536
        %v665 = vsel %vm457, %v441, %v545
        %v666 = vsel %vm458, %v442, %v554
        %v667 = vsel %vm459, %v443, %v563
        %v668 = vsel %vm460, %v444, %v572
        %v669 = vsel %vm461, %v445, %v581
        %v670 = vsel %vm462, %v446, %v590
        %v671 = vsel %vm463, %v447, %v599
        %v672 = vsel %vm464, %v448, %v608
        %v673 = vsel %vm465, %v449, %v617
        %v674 = vsel %vm466, %v450, %v626
        %v675 = vsel %vm467, %v451, %v635
        %v676 = vsel %vm468, %v452, %v644
        %v677 = vsel %vm469, %v453, %v653
        %v678 = vsel %vm470, %v454, %v662
        %v679 = vld [vmem:[%s362] sm:$0xff]
        %v680 = vld [vmem:[%s362 + $0x8] sm:$0xff]
        %v681 = vld [vmem:[%s362 + $0x10] sm:$0xff]
        %v682 = vld [vmem:[%s362 + $0x18] sm:$0xff]
        %v683 = vld [vmem:[%s362 + $0x20] sm:$0xff]
        %v684 = vld [vmem:[%s362 + $0x28] sm:$0xff]
        %v685 = vld [vmem:[%s362 + $0x30] sm:$0xff]
        %v686 = vld [vmem:[%s362 + $0x38] sm:$0xff]
        %v687 = vld [vmem:[%s362 + $0x40] sm:$0xff]
        %v688 = vld [vmem:[%s362 + $0x48] sm:$0xff]
        %v689 = vld [vmem:[%s362 + $0x50] sm:$0xff]
        %v690 = vld [vmem:[%s362 + $0x58] sm:$0xff]
        %v691 = vld [vmem:[%s362 + $0x60] sm:$0xff]
        %v692 = vld [vmem:[%s362 + $0x68] sm:$0xff]
        %v693 = vld [vmem:[%s362 + $0x70] sm:$0xff]
        %v694 = vld [vmem:[%s362 + $0x78] sm:$0xff]
        %v695 = vmul.f32 %v679, %v663
        %v696 = vmul.f32 %v680, %v664
        %v697 = vmul.f32 %v681, %v665
        %v698 = vmul.f32 %v682, %v666
        %v699 = vmul.f32 %v683, %v667
        %v700 = vmul.f32 %v684, %v668
        %v701 = vmul.f32 %v685, %v669
        %v702 = vmul.f32 %v686, %v670
        %v703 = vmul.f32 %v687, %v671
        %v704 = vmul.f32 %v688, %v672
        %v705 = vmul.f32 %v689, %v673
        %v706 = vmul.f32 %v690, %v674
        %v707 = vmul.f32 %v691, %v675
        %v708 = vmul.f32 %v692, %v676
        %v709 = vmul.f32 %v693, %v677
        %v710 = vmul.f32 %v694, %v678
        %v711 = vld [vmem:[%s371] sm:$0xff]
        %v712 = vld [vmem:[%s371 + $0x8] sm:$0xff]
        %v713 = vld [vmem:[%s371 + $0x10] sm:$0xff]
        %v714 = vld [vmem:[%s371 + $0x18] sm:$0xff]
        %v715 = vld [vmem:[%s371 + $0x20] sm:$0xff]
        %v716 = vld [vmem:[%s371 + $0x28] sm:$0xff]
        %v717 = vld [vmem:[%s371 + $0x30] sm:$0xff]
        %v718 = vld [vmem:[%s371 + $0x38] sm:$0xff]
        %v719 = vld [vmem:[%s371 + $0x40] sm:$0xff]
        %v720 = vld [vmem:[%s371 + $0x48] sm:$0xff]
        %v721 = vld [vmem:[%s371 + $0x50] sm:$0xff]
        %v722 = vld [vmem:[%s371 + $0x58] sm:$0xff]
        %v723 = vld [vmem:[%s371 + $0x60] sm:$0xff]
        %v724 = vld [vmem:[%s371 + $0x68] sm:$0xff]
        %v725 = vld [vmem:[%s371 + $0x70] sm:$0xff]
        %v726 = vld [vmem:[%s371 + $0x78] sm:$0xff]
        %v727 = vadd.f32 %v695, %v711
        %v728 = vadd.f32 %v696, %v712
        %v729 = vadd.f32 %v697, %v713
        %v730 = vadd.f32 %v698, %v714
        %v731 = vadd.f32 %v699, %v715
        %v732 = vadd.f32 %v700, %v716
        %v733 = vadd.f32 %v701, %v717
        %v734 = vadd.f32 %v702, %v718
        %v735 = vadd.f32 %v703, %v719
        %v736 = vadd.f32 %v704, %v720
        %v737 = vadd.f32 %v705, %v721
        %v738 = vadd.f32 %v706, %v722
        %v739 = vadd.f32 %v707, %v723
        %v740 = vadd.f32 %v708, %v724
        %v741 = vadd.f32 %v709, %v725
        %v742 = vadd.f32 %v710, %v726
        %743 = vst [vmem:[%s431] sm:$0xff] %v727
        %744 = vst [vmem:[%s431 + $0x8] sm:$0xff] %v728
        %745 = vst [vmem:[%s431 + $0x10] sm:$0xff] %v729
        %746 = vst [vmem:[%s431 + $0x18] sm:$0xff] %v730
        %747 = vst [vmem:[%s431 + $0x20] sm:$0xff] %v731
        %748 = vst [vmem:[%s431 + $0x28] sm:$0xff] %v732
        %749 = vst [vmem:[%s431 + $0x30] sm:$0xff] %v733
        %750 = vst [vmem:[%s431 + $0x38] sm:$0xff] %v734
        %751 = vst [vmem:[%s431 + $0x40] sm:$0xff] %v735
        %752 = vst [vmem:[%s431 + $0x48] sm:$0xff] %v736
        %753 = vst [vmem:[%s431 + $0x50] sm:$0xff] %v737
        %754 = vst [vmem:[%s431 + $0x58] sm:$0xff] %v738
        %755 = vst [vmem:[%s431 + $0x60] sm:$0xff] %v739
        %756 = vst [vmem:[%s431 + $0x68] sm:$0xff] %v740
        %757 = vst [vmem:[%s431 + $0x70] sm:$0xff] %v741
        %758 = vst [vmem:[%s431 + $0x78] sm:$0xff] %v742
        %p759 = scmp.eq.s32.totalorder %s38, 0
        // Predicated region
        $region57: #{tpu_custom_call.1} parent=39 // pred_check
          %p760 = pneg %p759
        $region58: #{tpu_custom_call.1} parent=39 // pred_check_branch
          %762 = sbr.rel (%p760) target = $region60
        $region59: #{tpu_custom_call.1} parent=39 // pred_region
          %763 = vst [vmem:[#allocation2] sm:$0xff] 0.0
        $region60: #{tpu_custom_call.1} parent=39 // pred_fallthru
          _
        %v764 = vld [vmem:[#allocation2] sm:$0xff]
        %v765 = vld [vmem:[%s353] sm:$0xff]
        %766 = vmatprep.subr.mxu0 0.0
        %767 = vmatpush1.xpose.msra.mxu0 %v727
        %768 = vmatprep.subr.mxu0 0.0
        %769 = vmatpush1.xpose.msra.mxu0 %v728
        %770 = vmatprep.subr.mxu0 0.0
        %771 = vmatpush1.xpose.msra.mxu0 %v729
        %772 = vmatprep.subr.mxu0 0.0
        %773 = vmatpush1.xpose.msra.mxu0 %v730
        %774 = vmatprep.subr.mxu0 0.0
        %775 = vmatpush1.xpose.msra.mxu0 %v731
        %776 = vmatprep.subr.mxu0 0.0
        %777 = vmatpush1.xpose.msra.mxu0 %v732
        %778 = vmatprep.subr.mxu0 0.0
        %779 = vmatpush1.xpose.msra.mxu0 %v733
        %780 = vmatprep.subr.mxu0 0.0
        %781 = vmatpush1.xpose.msra.mxu0 %v734
        %782 = vmatprep.subr.mxu0 0.0
        %783 = vmatpush1.xpose.msra.mxu0 %v735
        %784 = vmatprep.subr.mxu0 0.0
        %785 = vmatpush1.xpose.msra.mxu0 %v736
        %786 = vmatprep.subr.mxu0 0.0
        %787 = vmatpush1.xpose.msra.mxu0 %v737
        %788 = vmatprep.subr.mxu0 0.0
        %789 = vmatpush1.xpose.msra.mxu0 %v738
        %790 = vmatprep.subr.mxu0 0.0
        %791 = vmatpush1.xpose.msra.mxu0 %v739
        %792 = vmatprep.subr.mxu0 0.0
        %793 = vmatpush1.xpose.msra.mxu0 %v740
        %794 = vmatprep.subr.mxu0 0.0
        %795 = vmatpush1.xpose.msra.mxu0 %v741
        %796 = vmatprep.subr.mxu0 0.0
        %797 = vmatpush1.xpose.msra.mxu0 %v742
        %798 = vmatprep.subr.mxu0 0.0
        %799 = vmatpush1.xpose.msra.mxu0 0.0
        %800 = vmatprep.subr.mxu0 0.0
        %801 = vmatpush1.xpose.msra.mxu0 0.0
        %802 = vmatprep.subr.mxu0 0.0
        %803 = vmatpush1.xpose.msra.mxu0 0.0
        %804 = vmatprep.subr.mxu0 0.0
        %805 = vmatpush1.xpose.msra.mxu0 0.0
        %806 = vmatprep.subr.mxu0 0.0
        %807 = vmatpush1.xpose.msra.mxu0 0.0
        %808 = vmatprep.subr.mxu0 0.0
        %809 = vmatpush1.xpose.msra.mxu0 0.0
        %810 = vmatprep.subr.mxu0 0.0
        %811 = vmatpush1.xpose.msra.mxu0 0.0
        %812 = vmatprep.subr.mxu0 0.0
        %813 = vmatpush1.xpose.msra.mxu0 0.0
        %814 = vmatprep.subr.mxu0 0.0
        %815 = vmatpush1.xpose.msra.mxu0 0.0
        %816 = vmatprep.subr.mxu0 0.0
        %817 = vmatpush1.xpose.msra.mxu0 0.0
        %818 = vmatprep.subr.mxu0 0.0
        %819 = vmatpush1.xpose.msra.mxu0 0.0
        %820 = vmatprep.subr.mxu0 0.0
        %821 = vmatpush1.xpose.msra.mxu0 0.0
        %822 = vmatprep.subr.mxu0 0.0
        %823 = vmatpush1.xpose.msra.mxu0 0.0
        %824 = vmatprep.subr.mxu0 0.0
        %825 = vmatpush1.xpose.msra.mxu0 0.0
        %826 = vmatprep.subr.mxu0 0.0
        %827 = vmatpush1.xpose.msra.mxu0 0.0
        %828 = vmatprep.subr.mxu0 0.0
        %829 = vmatpush1.xpose.msra.mxu0 0.0
        %830 = vmatprep.mubr.f32.mxu0 0.0
        %831 = vmatmul.mubr.f32.gmra.mrb[0].mxu0 %v765
        %v832 = vpop.f32.mrb[0].mxu0
        %v833 = vadd.f32 0.0, %v832
        %v834 = vpop.f32.mrb[0].mxu0
        %835 = vdwg.mxu0
        %v836 = vadd.f32 %v764, %v833
        %837 = vst [vmem:[#allocation2] sm:$0xff] %v836
        %p838 = scmp.eq.s32.totalorder %s38, 2
        // Predicated region
        $region61: #{tpu_custom_call.1} parent=39 // pred_check
          %p839 = pneg %p838
        $region62: #{tpu_custom_call.1} parent=39 // pred_check_branch
          %841 = sbr.rel (%p839) target = $region64
        $region63: #{tpu_custom_call.1} parent=39 // pred_region
          %v842 = vld [vmem:[#allocation2] sm:$0xff]
          %v843 = vld [vmem:[%s437] sm:$0x1]
          %v845 = vlaneseq
          %v846 = vshrl.u32 %v845, 7
          %v847 = vsub.s32 0, %v846
          %v848 = vrot.slane %v843, %v847
          %v850 = vadd.f32 %v842, %v848
          %851 = vst [vmem:[%s424] sm:$0xff] %v850
        $region64: #{tpu_custom_call.1} parent=39 // pred_fallthru
          _
        %s852 = sand.u32 %s189, 1
        %s853 = scalar_lea.sflag [#allocation5], %s852
        %s854 = sand.u32 %s189, 1
        %s855 = smul.addr %s854, 8
        %s856 = scalar_lea.vmem [#allocation11], %s855
        %s857 = sand.u32 %s217, 1
        %s858 = scalar_lea.sflag [#allocation13], %s857
        %s859 = sand.u32 %s217, 1
        %s860 = smul.addr %s859, 128
        %s861 = scalar_lea.vmem [#allocation12], %s860
        // Predicated region
        $region65: #{tpu_custom_call.1} parent=39 // pred_check
          %p862 = pneg %p199
        $region66: #{tpu_custom_call.1} parent=39 // pred_check_branch
          %864 = sbr.rel (%p862) target = $region68
        $region67: #{tpu_custom_call.1} parent=39 // pred_region
          %s866 = ssub.s32 128, 128
          %867 = vsyncadd %s853, %s866
          %s868 = smul.addr %s37, 128
          %s869 = scalar_lea.hbm %s5, %s868
          %s871 = sshll.u32 %s856, 4
          %s872 = int_to_ptr.vmem [resolvable:$true] %s871
          %874 = dma.vmem_to_hbm [thread:$0]  %s872, 128, %s869, %s853
        $region68: #{tpu_custom_call.1} parent=39 // pred_fallthru
          _
        // Predicated region
        $region69: #{tpu_custom_call.1} parent=39 // pred_check
          %p875 = pneg %p227
        $region70: #{tpu_custom_call.1} parent=39 // pred_check_branch
          %877 = sbr.rel (%p875) target = $region72
        $region71: #{tpu_custom_call.1} parent=39 // pred_region
          %s878 = smul.u32 16, %s37
          %s880 = ssub.s32 2048, 2048
          %881 = vsyncadd %s858, %s880
          %s882 = smul.addr %s878, 3
          %s883 = sadd.s32 %s38, %s882
          %s884 = smul.addr %s883, 128
          %s885 = scalar_lea.hbm %s6, %s884
          %s886 = sshll.u32 %s861, 4
          %s887 = int_to_ptr.vmem [resolvable:$true] %s886
          %892 = dma.vmem_to_hbm [thread:$0]  %s887, 2048, %s885, %s858, 128, 384, 8
        $region72: #{tpu_custom_call.1} parent=39 // pred_fallthru
          _
      $region40: #{tpu_custom_call.1} parent=5 // pred_fallthru
        _
      %p893 = scmp.le.s32.totalorder 2, %s28
      // Predicated region
      $region73: #{tpu_custom_call.1} parent=5 // pred_check
        %p894 = pneg %p893
      $region74: #{tpu_custom_call.1} parent=5 // pred_check_branch
        %896 = sbr.rel (%p894) target = $region76
      $region75: #{tpu_custom_call.1} parent=5 // pred_region
        %s897 = ssub.s32 %s28, 2
        // Predicated region
        $region77: #{tpu_custom_call.1} parent=75 // pred_check
          %p898 = pneg %p205
        $region78: #{tpu_custom_call.1} parent=75 // pred_check_branch
          %900 = sbr.rel (%p898) target = $region80
        $region79: #{tpu_custom_call.1} parent=75 // pred_region
          %s901 = sand.u32 %s190, 1
          %s902 = scalar_lea.sflag [#allocation5], %s901
          %s903 = sand.u32 %s190, 1
          %s904 = smul.addr %s903, 8
          %s905 = scalar_lea.vmem [#allocation11], %s904
          %906 = dma.done %s902, 128
        $region80: #{tpu_custom_call.1} parent=75 // pred_fallthru
          _
        // Predicated region
        $region81: #{tpu_custom_call.1} parent=75 // pred_check
          %p907 = pneg %p233
        $region82: #{tpu_custom_call.1} parent=75 // pred_check_branch
          %909 = sbr.rel (%p907) target = $region84
        $region83: #{tpu_custom_call.1} parent=75 // pred_region
          %s910 = sand.u32 %s218, 1
          %s911 = scalar_lea.sflag [#allocation13], %s910
          %s912 = sand.u32 %s218, 1
          %s913 = smul.addr %s912, 128
          %s914 = scalar_lea.vmem [#allocation12], %s913
          %915 = dma.done %s911, 2048
        $region84: #{tpu_custom_call.1} parent=75 // pred_fallthru
          _
      $region76: #{tpu_custom_call.1} parent=5 // pred_fallthru
        _
    $region6: #{tpu_custom_call.1} parent=1 // loop_footer
      %s32 = sadd.s32 1, %s28
    $region7: #{tpu_custom_call.1} parent=1 // loop_footer_branch
      %27 = sbr.rel target = $region3
    $region8: #{tpu_custom_call.1} parent=1 // loop_exit
      _
    %916 = vsyncpa [#allocation4], 1
    %s917 = scalar_lea.sflag [#allocation4], 1
    %918 = vsyncpa %s917, 1
    %919 = vsyncpa [#allocation7], 1
    %s920 = scalar_lea.sflag [#allocation7], 1
    %921 = vsyncpa %s920, 1
    %922 = vsyncpa [#allocation10], 1
    %s923 = scalar_lea.sflag [#allocation10], 1
    %924 = vsyncpa %s923, 1
    %925 = vsyncpa [#allocation5], 1
    %s926 = scalar_lea.sflag [#allocation5], 1
    %927 = vsyncpa %s926, 1
    %928 = vsyncpa [#allocation13], 1
    %s929 = scalar_lea.sflag [#allocation13], 1
    %930 = vsyncpa %s929, 1

</llo_original>
